<compile_context>
chip_gen: v5e
topology: v5e:2x2
jax: 0.10.0
libtpu: 0.0.40
codegen_flags: <defaults>
</compile_context>

<pallas_src>
import jax
import jax.numpy as jnp
from jax import lax
from jax.experimental import pallas as pl
from jax.experimental.pallas import tpu as pltpu

LANE = 128          # vreg lane width
NUM_CORES = 2       # leading "parallel" grid axis -> split across v7x's 2 TensorCores
MAX_BLOCK_ROWS = 2048   # (2048, 128) f32 = 1 MiB per stream per buffer (~85% HBM roofline regime)
CHUNK_ROWS = 128        # sub-chunk of the per-block reduction (bounds live vregs / VMEM temporaries)


def _vmem_capacity_bytes():
    """Per-core VMEM capacity; conservative 64 MiB fallback (v7x) if the query fails."""
    try:
        return int(getattr(pltpu.get_tpu_info(), "vmem_capacity_bytes", 64 * 2**20))
    except Exception:
        return 64 * 2**20


def _make_kernel(num_pairs, rows_valid, block_rows, blocks_per_core, chunk_rows,
                 coeffs, needs_mask):
    """Kernel computing sum_p coeffs[p] * sum(|a_p - b_p|) as per-core partials.

    Grid = (NUM_CORES ["parallel"], blocks_per_core ["arbitrary"]).
    Output block (1, 1, LANE) per core holds the weighted per-lane partial sums.
    """

    def kernel(*refs):
        in_refs = refs[: 2 * num_pairs]
        out_ref = refs[2 * num_pairs]
        acc_refs = refs[2 * num_pairs + 1:]

        c = pl.program_id(0)   # core / outer-parallel index
        i = pl.program_id(1)   # row-block index within this core (reduction axis)

        @pl.when(i == 0)
        def _init():
            for acc in acc_refs:
                acc[...] = jnp.zeros_like(acc)

        # Logical (unclamped) first row of this grid step. The index_map clamps the DMA
        # so it always stays in bounds; `rem` masks duplicated / partial rows to zero.
        start_row = (c * blocks_per_core + i) * block_rows
        rem = rows_valid - start_row   # rows of this logical block that are real data

        def accumulate(masked):
            for p in range(num_pairs):
                a_ref = in_refs[2 * p]
                b_ref = in_refs[2 * p + 1]
                partial = jnp.zeros((1, LANE), jnp.float32)
                # Static sub-chunk loop: bounds the live |a-b| intermediate to
                # (chunk_rows, 128) regardless of block size.
                for r0 in range(0, block_rows, chunk_rows):
                    nr = min(chunk_rows, block_rows - r0)
                    a = a_ref[pl.ds(r0, nr), :].astype(jnp.float32)
                    b = b_ref[pl.ds(r0, nr), :].astype(jnp.float32)
                    d = jnp.abs(a - b)
                    if masked:
                        # Select (not multiply): uninitialized VMEM rows may hold NaN/Inf.
                        row_ids = lax.broadcasted_iota(jnp.int32, (nr, 1), 0)
                        d = jnp.where(row_ids < (rem - r0), d, 0.0)
                    # Sublane (XLU) reduction keeps the accumulator at (1, LANE).
                    partial = partial + jnp.sum(d, axis=0, keepdims=True)
                acc_refs[p][...] += partial

        if needs_mask:
            # Masking only runs on boundary / overflow blocks; the common case is the
            # unmasked fast path (keeps ~1500 VALU ops/step off the hot loop on v7x bf16).
            @pl.when(rem >= block_rows)
            def _full():
                accumulate(masked=False)

            @pl.when(rem < block_rows)
            def _ragged():
                accumulate(masked=True)
        else:
            accumulate(masked=False)

        @pl.when(i == pl.num_programs(1) - 1)
        def _finalize():
            # Fold loss weights and 1/numel (trace-time constants) into the kernel.
            combined = coeffs[0] * acc_refs[0][...]
            for p in range(1, num_pairs):
                combined = combined + coeffs[p] * acc_refs[p][...]
            out_ref[...] = combined.reshape(1, 1, LANE)

    return kernel


def _weighted_abs_sum(pairs, coeffs):
    """Returns sum_p coeffs[p] * sum(|a_p - b_p|) as a float32 scalar.

    All pairs must share the same numel (they share one pipelined grid).
    """
    num_pairs = len(pairs)
    n = int(pairs[0][0].size)
    assert all(int(a.size) == n and int(b.size) == n for a, b in pairs)

    flat = [(jnp.reshape(a, (-1,)), jnp.reshape(b, (-1,))) for a, b in pairs]

    # dtype-aware sublane multiple: f32 -> 8, bf16/f16 -> 16, int8/fp8 -> 32.
    sub = 8
    for a, b in flat:
        sub = max(sub, 32 // a.dtype.itemsize, 32 // b.dtype.itemsize)

    rows = n // LANE
    if (n % LANE) != 0 or rows < sub:
        # TODO(synk): a 128-misaligned numel would need either a prefix-slice HBM copy
        # (doubles HBM traffic) or a manual-DMA lane-masked last tile to feed the Pallas
        # path; XLA's fused reduce is already HBM-bound here, so fall back instead.
        tot = jnp.float32(0.0)
        for (a, b), w in zip(flat, coeffs):
            tot = tot + jnp.float32(w) * jnp.sum(
                jnp.abs(a.astype(jnp.float32) - b.astype(jnp.float32)))
        return tot

    main2d = [(a.reshape(rows, LANE), b.reshape(rows, LANE)) for a, b in flat]

    # ---- block sizing from the per-generation VMEM budget ----------------------------
    row_bytes = sum(LANE * x.dtype.itemsize for ab in main2d for x in ab)  # all streams, 1 row
    vmem_cap = _vmem_capacity_bytes()
    input_budget = min(24 * 2**20, vmem_cap // 3)          # double-buffered input streams
    block_rows = min(MAX_BLOCK_ROWS, rows, max(sub, input_budget // (2 * row_bytes)))
    block_rows = max(sub, (block_rows // sub) * sub)        # dtype-aware sublane rounding
    chunk_rows = min(CHUNK_ROWS, block_rows)

    nblocks = -(-rows // block_rows)                        # ceil-div
    blocks_per_core = -(-nblocks // NUM_CORES)
    needs_mask = (rows % block_rows != 0) or (blocks_per_core * NUM_CORES != nblocks)

    def in_index_map(c, i):
        # Clamp so overflow steps (odd block counts across cores) re-read the last
        # in-bounds block; their contribution is masked to zero inside the kernel.
        return (jnp.minimum(c * blocks_per_core + i, nblocks - 1), 0)

    # Right-size the VMEM limit: double-buffered inputs + generous Mosaic headroom,
    # but well under the per-core capacity (64 MiB on v7x, 128 MiB on v5e/v6e).
    need_bytes = 2 * row_bytes * block_rows + 64 * 1024
    vmem_limit = int(min(max(need_bytes + 8 * 2**20, 32 * 2**20), int(vmem_cap * 0.85)))
    vmem_limit = max(vmem_limit, need_bytes + 4 * 2**20)

    in_bytes = sum(int(x.size) * x.dtype.itemsize for ab in main2d for x in ab)
    cost = pl.CostEstimate(
        flops=3 * num_pairs * rows * LANE,
        transcendentals=0,
        bytes_accessed=in_bytes + NUM_CORES * LANE * 4,
    )

    out = pl.pallas_call(
        _make_kernel(num_pairs, rows, block_rows, blocks_per_core, chunk_rows,
                     tuple(float(c) for c in coeffs), needs_mask),
        out_shape=jax.ShapeDtypeStruct((NUM_CORES, 1, LANE), jnp.float32),
        grid_spec=pltpu.PrefetchScalarGridSpec(
            num_scalar_prefetch=0,
            grid=(NUM_CORES, blocks_per_core),
            in_specs=[pl.BlockSpec((block_rows, LANE), in_index_map)
                      for _ in range(2 * num_pairs)],
            out_specs=pl.BlockSpec((1, 1, LANE), lambda c, i: (c, 0, 0)),
            scratch_shapes=[pltpu.VMEM((1, LANE), jnp.float32)
                            for _ in range(num_pairs)],
        ),
        compiler_params=pltpu.CompilerParams(
            dimension_semantics=("parallel", "arbitrary"),
            vmem_limit_bytes=vmem_limit,
        ),
        cost_estimate=cost,
    )(*[x for ab in main2d for x in ab])

    # Reduce the per-core / per-lane weighted partials (tiny: NUM_CORES*128 floats).
    return jnp.sum(out)


def rasaf_loss(output1, output2, output3, target1, target2, target3, epchs=None):
    """Forward pass of RASAFLoss.

    cost = L1(target1, output1)*w1 + L1(target2, output2)*w2 + L1(target3, output3)*w4
    with (w1, w2, w4) = (1, 1, 1), or (1, 2, 2) if epchs is not None and epchs > 6.

    NOTE: `epchs` must be a static Python value (as in the PyTorch module); if you jit
    this function, mark it with static_argnums — a traced epchs would fail the branch.
    """
    w1, w2, w4 = (1.0, 1.0, 1.0)
    if epchs is not None and epchs > 6:
        w1, w2, w4 = (1.0, 2.0, 2.0)

    triples = [(target1, output1, w1), (target2, output2, w2), (target3, output3, w4)]

    if target1.size == target2.size == target3.size:
        # Fused: one pallas_call streams all six slabs; weights / (1/numel) folded in.
        n = float(target1.size)
        return _weighted_abs_sum([(t, o) for t, o, _ in triples],
                                 [w / n for _, _, w in triples])

    # Unequal sizes: one call per pair (each still weighted + normalized in-kernel).
    loss = jnp.float32(0.0)
    for t, o, w in triples:
        loss = loss + _weighted_abs_sum([(t, o)], [w / float(t.size)])
    return loss


if __name__ == "__main__":
    key = jax.random.PRNGKey(0)
    ks = jax.random.split(key, 6)
    shape = (2, 4, 16, 16)  # NCHW, small synthetic shapes

    output1 = jax.random.normal(ks[0], shape, dtype=jnp.float32)
    output2 = jax.random.normal(ks[1], shape, dtype=jnp.float32)
    output3 = jax.random.normal(ks[2], shape, dtype=jnp.float32)
    target1 = jax.random.normal(ks[3], shape, dtype=jnp.float32)
    target2 = jax.random.normal(ks[4], shape, dtype=jnp.float32)
    target3 = jax.random.normal(ks[5], shape, dtype=jnp.float32)

    # epchs > 6 branch (weights 1, 2, 2)
    loss = jax.block_until_ready(
        rasaf_loss(output1, output2, output3, target1, target2, target3, epchs=10))
    ref = (jnp.mean(jnp.abs(target1 - output1)) * 1.0
           + jnp.mean(jnp.abs(target2 - output2)) * 2.0
           + jnp.mean(jnp.abs(target3 - output3)) * 2.0)
    assert jnp.allclose(loss, ref, rtol=1e-5, atol=1e-5), (loss, ref)

    # default-weight branch
    loss0 = jax.block_until_ready(
        rasaf_loss(output1, output2, output3, target1, target2, target3))
    ref0 = (jnp.mean(jnp.abs(target1 - output1))
            + jnp.mean(jnp.abs(target2 - output2))
            + jnp.mean(jnp.abs(target3 - output3)))
    assert jnp.allclose(loss0, ref0, rtol=1e-5, atol=1e-5), (loss0, ref0)

    # Larger check: exercises multi-block grid, core-split, and the masked boundary path
    # (2304 rows of 128 -> 2 blocks of 2048, second block partial).
    shape2 = (2, 8, 128, 144)
    ks2 = jax.random.split(jax.random.PRNGKey(1), 6)
    b1, b2, b3 = (jax.random.normal(ks2[i], shape2, dtype=jnp.float32) for i in range(3))
    c1, c2, c3 = (jax.random.normal(ks2[i + 3], shape2, dtype=jnp.float32) for i in range(3))
    loss2 = jax.block_until_ready(rasaf_loss(b1, b2, b3, c1, c2, c3, epchs=10))
    ref2 = (jnp.mean(jnp.abs(c1 - b1))
            + jnp.mean(jnp.abs(c2 - b2)) * 2.0
            + jnp.mean(jnp.abs(c3 - b3)) * 2.0)
    assert jnp.allclose(loss2, ref2, rtol=1e-4, atol=1e-4), (loss2, ref2)

    print("KERNEL_OK")
</pallas_src>

<mosaic_0001>
module attributes {stable_mosaic.version = 11 : i64} {
  func.func @kernel(%arg0: i32, %arg1: i32, %arg2: memref<16x128xf32, #tpu.memory_space<vmem>>, %arg3: memref<16x128xf32, #tpu.memory_space<vmem>>, %arg4: memref<16x128xf32, #tpu.memory_space<vmem>>, %arg5: memref<16x128xf32, #tpu.memory_space<vmem>>, %arg6: memref<16x128xf32, #tpu.memory_space<vmem>>, %arg7: memref<16x128xf32, #tpu.memory_space<vmem>>, %arg8: memref<1x1x128xf32, #tpu.memory_space<vmem>>, %arg9: memref<1x128xf32, #tpu.memory_space<vmem>>, %arg10: memref<1x128xf32, #tpu.memory_space<vmem>>, %arg11: memref<1x128xf32, #tpu.memory_space<vmem>>) attributes {dimension_semantics = [#tpu.dimension_semantics<parallel>, #tpu.dimension_semantics<arbitrary>], iteration_bounds = array<i64: 2, 1>, scalar_prefetch = 0 : i64, scratch_operands = 3 : i64, tpu.core_type = #tpu.core_type<tc>, window_params = [{transform_indices = @transform_0, window_bounds = array<i64: 16, 128>}, {transform_indices = @transform_1, window_bounds = array<i64: 16, 128>}, {transform_indices = @transform_2, window_bounds = array<i64: 16, 128>}, {transform_indices = @transform_3, window_bounds = array<i64: 16, 128>}, {transform_indices = @transform_4, window_bounds = array<i64: 16, 128>}, {transform_indices = @transform_5, window_bounds = array<i64: 16, 128>}, {transform_indices = @transform_6, window_bounds = array<i64: 1, 1, 128>}]} {
    %c0_i32 = arith.constant 0 : i32
    %0 = arith.cmpi eq, %arg1, %c0_i32 : i32
    %1 = arith.extui %0 : i1 to i32
    %c0_i32_0 = arith.constant 0 : i32
    %2 = arith.cmpi ne, %1, %c0_i32_0 : i32
    scf.if %2 {
      %cst = arith.constant 0.000000e+00 : f32
      %16 = vector.broadcast %cst : f32 to vector<1x128xf32>
      %c0 = arith.constant 0 : index
      %c0_8 = arith.constant 0 : index
      %17 = vector.load %arg9[%c0, %c0_8] : memref<1x128xf32, #tpu.memory_space<vmem>>, vector<1x128xf32>
      tpu.vector_store %arg9[%c0, %c0_8], %16 {strides = array<i32>} : memref<1x128xf32, #tpu.memory_space<vmem>>, vector<1x128xf32>,
      %cst_9 = arith.constant 0.000000e+00 : f32
      %18 = vector.broadcast %cst_9 : f32 to vector<1x128xf32>
      %c0_10 = arith.constant 0 : index
      %c0_11 = arith.constant 0 : index
      %19 = vector.load %arg10[%c0_10, %c0_11] : memref<1x128xf32, #tpu.memory_space<vmem>>, vector<1x128xf32>
      tpu.vector_store %arg10[%c0_10, %c0_11], %18 {strides = array<i32>} : memref<1x128xf32, #tpu.memory_space<vmem>>, vector<1x128xf32>,
      %cst_12 = arith.constant 0.000000e+00 : f32
      %20 = vector.broadcast %cst_12 : f32 to vector<1x128xf32>
      %c0_13 = arith.constant 0 : index
      %c0_14 = arith.constant 0 : index
      %21 = vector.load %arg11[%c0_13, %c0_14] : memref<1x128xf32, #tpu.memory_space<vmem>>, vector<1x128xf32>
      tpu.vector_store %arg11[%c0_13, %c0_14], %20 {strides = array<i32>} : memref<1x128xf32, #tpu.memory_space<vmem>>, vector<1x128xf32>,
    } else {
    }
    %c1_i32 = arith.constant 1 : i32
    %3 = arith.muli %arg0, %c1_i32 : i32
    %4 = arith.addi %3, %arg1 : i32
    %c16_i32 = arith.constant 16 : i32
    %5 = arith.muli %4, %c16_i32 : i32
    %c16_i32_1 = arith.constant 16 : i32
    %6 = arith.subi %c16_i32_1, %5 : i32
    %c16_i32_2 = arith.constant 16 : i32
    %7 = arith.cmpi sge, %6, %c16_i32_2 : i32
    %8 = arith.extui %7 : i1 to i32
    %c0_i32_3 = arith.constant 0 : i32
    %9 = arith.cmpi ne, %8, %c0_i32_3 : i32
    scf.if %9 {
      %cst = arith.constant 0.000000e+00 : f32
      %16 = vector.broadcast %cst : f32 to vector<1x128xf32>
      %c0 = arith.constant 0 : index
      %c0_8 = arith.constant 0 : index
      %17 = vector.load %arg2[%c0, %c0_8] : memref<16x128xf32, #tpu.memory_space<vmem>>, vector<16x128xf32>
      %c0_9 = arith.constant 0 : index
      %c0_10 = arith.constant 0 : index
      %18 = vector.load %arg3[%c0_9, %c0_10] : memref<16x128xf32, #tpu.memory_space<vmem>>, vector<16x128xf32>
      %19 = arith.subf %17, %18 : vector<16x128xf32>
      %20 = math.absf %19 : vector<16x128xf32>
      %cst_11 = arith.constant dense<0.000000e+00> : vector<128xf32>
      %21 = vector.multi_reduction <add>, %20, %cst_11 [0] : vector<16x128xf32> to vector<128xf32>
      %22 = vector.shape_cast %21 : vector<128xf32> to vector<1x128xf32>
      %23 = arith.addf %16, %22 : vector<1x128xf32>
      %c0_12 = arith.constant 0 : index
      %c0_13 = arith.constant 0 : index
      %24 = vector.load %arg9[%c0_12, %c0_13] : memref<1x128xf32, #tpu.memory_space<vmem>>, vector<1x128xf32>
      %25 = arith.addf %24, %23 : vector<1x128xf32>
      %c0_14 = arith.constant 0 : index
      %c0_15 = arith.constant 0 : index
      %26 = vector.load %arg9[%c0_14, %c0_15] : memref<1x128xf32, #tpu.memory_space<vmem>>, vector<1x128xf32>
      tpu.vector_store %arg9[%c0_14, %c0_15], %25 {strides = array<i32>} : memref<1x128xf32, #tpu.memory_space<vmem>>, vector<1x128xf32>,
      %cst_16 = arith.constant 0.000000e+00 : f32
      %27 = vector.broadcast %cst_16 : f32 to vector<1x128xf32>
      %c0_17 = arith.constant 0 : index
      %c0_18 = arith.constant 0 : index
      %28 = vector.load %arg4[%c0_17, %c0_18] : memref<16x128xf32, #tpu.memory_space<vmem>>, vector<16x128xf32>
      %c0_19 = arith.constant 0 : index
      %c0_20 = arith.constant 0 : index
      %29 = vector.load %arg5[%c0_19, %c0_20] : memref<16x128xf32, #tpu.memory_space<vmem>>, vector<16x128xf32>
      %30 = arith.subf %28, %29 : vector<16x128xf32>
      %31 = math.absf %30 : vector<16x128xf32>
      %cst_21 = arith.constant dense<0.000000e+00> : vector<128xf32>
      %32 = vector.multi_reduction <add>, %31, %cst_21 [0] : vector<16x128xf32> to vector<128xf32>
      %33 = vector.shape_cast %32 : vector<128xf32> to vector<1x128xf32>
      %34 = arith.addf %27, %33 : vector<1x128xf32>
      %c0_22 = arith.constant 0 : index
      %c0_23 = arith.constant 0 : index
      %35 = vector.load %arg10[%c0_22, %c0_23] : memref<1x128xf32, #tpu.memory_space<vmem>>, vector<1x128xf32>
      %36 = arith.addf %35, %34 : vector<1x128xf32>
      %c0_24 = arith.constant 0 : index
      %c0_25 = arith.constant 0 : index
      %37 = vector.load %arg10[%c0_24, %c0_25] : memref<1x128xf32, #tpu.memory_space<vmem>>, vector<1x128xf32>
      tpu.vector_store %arg10[%c0_24, %c0_25], %36 {strides = array<i32>} : memref<1x128xf32, #tpu.memory_space<vmem>>, vector<1x128xf32>,
      %cst_26 = arith.constant 0.000000e+00 : f32
      %38 = vector.broadcast %cst_26 : f32 to vector<1x128xf32>
      %c0_27 = arith.constant 0 : index
      %c0_28 = arith.constant 0 : index
      %39 = vector.load %arg6[%c0_27, %c0_28] : memref<16x128xf32, #tpu.memory_space<vmem>>, vector<16x128xf32>
      %c0_29 = arith.constant 0 : index
      %c0_30 = arith.constant 0 : index
      %40 = vector.load %arg7[%c0_29, %c0_30] : memref<16x128xf32, #tpu.memory_space<vmem>>, vector<16x128xf32>
      %41 = arith.subf %39, %40 : vector<16x128xf32>
      %42 = math.absf %41 : vector<16x128xf32>
      %cst_31 = arith.constant dense<0.000000e+00> : vector<128xf32>
      %43 = vector.multi_reduction <add>, %42, %cst_31 [0] : vector<16x128xf32> to vector<128xf32>
      %44 = vector.shape_cast %43 : vector<128xf32> to vector<1x128xf32>
      %45 = arith.addf %38, %44 : vector<1x128xf32>
      %c0_32 = arith.constant 0 : index
      %c0_33 = arith.constant 0 : index
      %46 = vector.load %arg11[%c0_32, %c0_33] : memref<1x128xf32, #tpu.memory_space<vmem>>, vector<1x128xf32>
      %47 = arith.addf %46, %45 : vector<1x128xf32>
      %c0_34 = arith.constant 0 : index
      %c0_35 = arith.constant 0 : index
      %48 = vector.load %arg11[%c0_34, %c0_35] : memref<1x128xf32, #tpu.memory_space<vmem>>, vector<1x128xf32>
      tpu.vector_store %arg11[%c0_34, %c0_35], %47 {strides = array<i32>} : memref<1x128xf32, #tpu.memory_space<vmem>>, vector<1x128xf32>,
    } else {
    }
    %c16_i32_4 = arith.constant 16 : i32
    %10 = arith.cmpi slt, %6, %c16_i32_4 : i32
    %11 = arith.extui %10 : i1 to i32
    %c0_i32_5 = arith.constant 0 : i32
    %12 = arith.cmpi ne, %11, %c0_i32_5 : i32
    scf.if %12 {
      %cst = arith.constant 0.000000e+00 : f32
      %16 = vector.broadcast %cst : f32 to vector<1x128xf32>
      %c0 = arith.constant 0 : index
      %c0_8 = arith.constant 0 : index
      %17 = vector.load %arg2[%c0, %c0_8] : memref<16x128xf32, #tpu.memory_space<vmem>>, vector<16x128xf32>
      %c0_9 = arith.constant 0 : index
      %c0_10 = arith.constant 0 : index
      %18 = vector.load %arg3[%c0_9, %c0_10] : memref<16x128xf32, #tpu.memory_space<vmem>>, vector<16x128xf32>
      %19 = arith.subf %17, %18 : vector<16x128xf32>
      %20 = math.absf %19 : vector<16x128xf32>
      %21 = tpu.iota {dimensions = array<i32: 0>} : vector<16x1xi32>
      %c0_i32_11 = arith.constant 0 : i32
      %22 = arith.subi %6, %c0_i32_11 : i32
      %23 = vector.broadcast %22 : i32 to vector<16x1xi32>
      %24 = arith.cmpi slt, %21, %23 : vector<16x1xi32>
      %cst_12 = arith.constant 0.000000e+00 : f32
      %25 = vector.shape_cast %24 : vector<16x1xi1> to vector<16x1xi1>
      %26 = vector.broadcast %25 : vector<16x1xi1> to vector<16x128xi1>
      %27 = vector.broadcast %cst_12 : f32 to vector<16x128xf32>
      %28 = arith.select %26, %20, %27 : vector<16x128xi1>, vector<16x128xf32>
      %cst_13 = arith.constant dense<0.000000e+00> : vector<128xf32>
      %29 = vector.multi_reduction <add>, %28, %cst_13 [0] : vector<16x128xf32> to vector<128xf32>
      %30 = vector.shape_cast %29 : vector<128xf32> to vector<1x128xf32>
      %31 = arith.addf %16, %30 : vector<1x128xf32>
      %c0_14 = arith.constant 0 : index
      %c0_15 = arith.constant 0 : index
      %32 = vector.load %arg9[%c0_14, %c0_15] : memref<1x128xf32, #tpu.memory_space<vmem>>, vector<1x128xf32>
      %33 = arith.addf %32, %31 : vector<1x128xf32>
      %c0_16 = arith.constant 0 : index
      %c0_17 = arith.constant 0 : index
      %34 = vector.load %arg9[%c0_16, %c0_17] : memref<1x128xf32, #tpu.memory_space<vmem>>, vector<1x128xf32>
      tpu.vector_store %arg9[%c0_16, %c0_17], %33 {strides = array<i32>} : memref<1x128xf32, #tpu.memory_space<vmem>>, vector<1x128xf32>,
      %cst_18 = arith.constant 0.000000e+00 : f32
      %35 = vector.broadcast %cst_18 : f32 to vector<1x128xf32>
      %c0_19 = arith.constant 0 : index
      %c0_20 = arith.constant 0 : index
      %36 = vector.load %arg4[%c0_19, %c0_20] : memref<16x128xf32, #tpu.memory_space<vmem>>, vector<16x128xf32>
      %c0_21 = arith.constant 0 : index
      %c0_22 = arith.constant 0 : index
      %37 = vector.load %arg5[%c0_21, %c0_22] : memref<16x128xf32, #tpu.memory_space<vmem>>, vector<16x128xf32>
      %38 = arith.subf %36, %37 : vector<16x128xf32>
      %39 = math.absf %38 : vector<16x128xf32>
      %40 = tpu.iota {dimensions = array<i32: 0>} : vector<16x1xi32>
      %c0_i32_23 = arith.constant 0 : i32
      %41 = arith.subi %6, %c0_i32_23 : i32
      %42 = vector.broadcast %41 : i32 to vector<16x1xi32>
      %43 = arith.cmpi slt, %40, %42 : vector<16x1xi32>
      %cst_24 = arith.constant 0.000000e+00 : f32
      %44 = vector.shape_cast %43 : vector<16x1xi1> to vector<16x1xi1>
      %45 = vector.broadcast %44 : vector<16x1xi1> to vector<16x128xi1>
      %46 = vector.broadcast %cst_24 : f32 to vector<16x128xf32>
      %47 = arith.select %45, %39, %46 : vector<16x128xi1>, vector<16x128xf32>
      %cst_25 = arith.constant dense<0.000000e+00> : vector<128xf32>
      %48 = vector.multi_reduction <add>, %47, %cst_25 [0] : vector<16x128xf32> to vector<128xf32>
      %49 = vector.shape_cast %48 : vector<128xf32> to vector<1x128xf32>
      %50 = arith.addf %35, %49 : vector<1x128xf32>
      %c0_26 = arith.constant 0 : index
      %c0_27 = arith.constant 0 : index
      %51 = vector.load %arg10[%c0_26, %c0_27] : memref<1x128xf32, #tpu.memory_space<vmem>>, vector<1x128xf32>
      %52 = arith.addf %51, %50 : vector<1x128xf32>
      %c0_28 = arith.constant 0 : index
      %c0_29 = arith.constant 0 : index
      %53 = vector.load %arg10[%c0_28, %c0_29] : memref<1x128xf32, #tpu.memory_space<vmem>>, vector<1x128xf32>
      tpu.vector_store %arg10[%c0_28, %c0_29], %52 {strides = array<i32>} : memref<1x128xf32, #tpu.memory_space<vmem>>, vector<1x128xf32>,
      %cst_30 = arith.constant 0.000000e+00 : f32
      %54 = vector.broadcast %cst_30 : f32 to vector<1x128xf32>
      %c0_31 = arith.constant 0 : index
      %c0_32 = arith.constant 0 : index
      %55 = vector.load %arg6[%c0_31, %c0_32] : memref<16x128xf32, #tpu.memory_space<vmem>>, vector<16x128xf32>
      %c0_33 = arith.constant 0 : index
      %c0_34 = arith.constant 0 : index
      %56 = vector.load %arg7[%c0_33, %c0_34] : memref<16x128xf32, #tpu.memory_space<vmem>>, vector<16x128xf32>
      %57 = arith.subf %55, %56 : vector<16x128xf32>
      %58 = math.absf %57 : vector<16x128xf32>
      %59 = tpu.iota {dimensions = array<i32: 0>} : vector<16x1xi32>
      %c0_i32_35 = arith.constant 0 : i32
      %60 = arith.subi %6, %c0_i32_35 : i32
      %61 = vector.broadcast %60 : i32 to vector<16x1xi32>
      %62 = arith.cmpi slt, %59, %61 : vector<16x1xi32>
      %cst_36 = arith.constant 0.000000e+00 : f32
      %63 = vector.shape_cast %62 : vector<16x1xi1> to vector<16x1xi1>
      %64 = vector.broadcast %63 : vector<16x1xi1> to vector<16x128xi1>
      %65 = vector.broadcast %cst_36 : f32 to vector<16x128xf32>
      %66 = arith.select %64, %58, %65 : vector<16x128xi1>, vector<16x128xf32>
      %cst_37 = arith.constant dense<0.000000e+00> : vector<128xf32>
      %67 = vector.multi_reduction <add>, %66, %cst_37 [0] : vector<16x128xf32> to vector<128xf32>
      %68 = vector.shape_cast %67 : vector<128xf32> to vector<1x128xf32>
      %69 = arith.addf %54, %68 : vector<1x128xf32>
      %c0_38 = arith.constant 0 : index
      %c0_39 = arith.constant 0 : index
      %70 = vector.load %arg11[%c0_38, %c0_39] : memref<1x128xf32, #tpu.memory_space<vmem>>, vector<1x128xf32>
      %71 = arith.addf %70, %69 : vector<1x128xf32>
      %c0_40 = arith.constant 0 : index
      %c0_41 = arith.constant 0 : index
      %72 = vector.load %arg11[%c0_40, %c0_41] : memref<1x128xf32, #tpu.memory_space<vmem>>, vector<1x128xf32>
      tpu.vector_store %arg11[%c0_40, %c0_41], %71 {strides = array<i32>} : memref<1x128xf32, #tpu.memory_space<vmem>>, vector<1x128xf32>,
    } else {
    }
    %c0_i32_6 = arith.constant 0 : i32
    %13 = arith.cmpi eq, %arg1, %c0_i32_6 : i32
    %14 = arith.extui %13 : i1 to i32
    %c0_i32_7 = arith.constant 0 : i32
    %15 = arith.cmpi ne, %14, %c0_i32_7 : i32
    scf.if %15 {
      %c0 = arith.constant 0 : index
      %c0_8 = arith.constant 0 : index
      %16 = vector.load %arg9[%c0, %c0_8] : memref<1x128xf32, #tpu.memory_space<vmem>>, vector<1x128xf32>
      %cst = arith.constant 4.8828125E-4 : f32
      %17 = vector.broadcast %cst : f32 to vector<1x128xf32>
      %18 = arith.mulf %17, %16 : vector<1x128xf32>
      %c0_9 = arith.constant 0 : index
      %c0_10 = arith.constant 0 : index
      %19 = vector.load %arg10[%c0_9, %c0_10] : memref<1x128xf32, #tpu.memory_space<vmem>>, vector<1x128xf32>
      %cst_11 = arith.constant 9.765625E-4 : f32
      %20 = vector.broadcast %cst_11 : f32 to vector<1x128xf32>
      %21 = arith.mulf %20, %19 : vector<1x128xf32>
      %22 = arith.addf %18, %21 : vector<1x128xf32>
      %c0_12 = arith.constant 0 : index
      %c0_13 = arith.constant 0 : index
      %23 = vector.load %arg11[%c0_12, %c0_13] : memref<1x128xf32, #tpu.memory_space<vmem>>, vector<1x128xf32>
      %cst_14 = arith.constant 9.765625E-4 : f32
      %24 = vector.broadcast %cst_14 : f32 to vector<1x128xf32>
      %25 = arith.mulf %24, %23 : vector<1x128xf32>
      %26 = arith.addf %22, %25 : vector<1x128xf32>
      %27 = vector.shape_cast %26 : vector<1x128xf32> to vector<1x1x128xf32>
      %c0_15 = arith.constant 0 : index
      %c0_16 = arith.constant 0 : index
      %c0_17 = arith.constant 0 : index
      %28 = vector.load %arg8[%c0_15, %c0_16, %c0_17] : memref<1x1x128xf32, #tpu.memory_space<vmem>>, vector<1x1x128xf32>
      tpu.vector_store %arg8[%c0_15, %c0_16, %c0_17], %27 {strides = array<i32>} : memref<1x1x128xf32, #tpu.memory_space<vmem>>, vector<1x1x128xf32>,
    } else {
    }
    return
  }
  func.func @transform_0(%arg0: i32, %arg1: i32) -> (i32, i32) {
    %c1_i32 = arith.constant 1 : i32
    %0 = arith.muli %arg0, %c1_i32 : i32
    %1 = arith.addi %0, %arg1 : i32
    %c0_i32 = arith.constant 0 : i32
    %2 = arith.minsi %1, %c0_i32 : i32
    %c0_i32_0 = arith.constant 0 : i32
    %c0_i32_1 = arith.constant 0 : i32
    return %2, %c0_i32_0 : i32, i32
  }
  func.func @transform_1(%arg0: i32, %arg1: i32) -> (i32, i32) {
    %c1_i32 = arith.constant 1 : i32
    %0 = arith.muli %arg0, %c1_i32 : i32
    %1 = arith.addi %0, %arg1 : i32
    %c0_i32 = arith.constant 0 : i32
    %2 = arith.minsi %1, %c0_i32 : i32
    %c0_i32_0 = arith.constant 0 : i32
    %c0_i32_1 = arith.constant 0 : i32
    return %2, %c0_i32_0 : i32, i32
  }
  func.func @transform_2(%arg0: i32, %arg1: i32) -> (i32, i32) {
    %c1_i32 = arith.constant 1 : i32
    %0 = arith.muli %arg0, %c1_i32 : i32
    %1 = arith.addi %0, %arg1 : i32
    %c0_i32 = arith.constant 0 : i32
    %2 = arith.minsi %1, %c0_i32 : i32
    %c0_i32_0 = arith.constant 0 : i32
    %c0_i32_1 = arith.constant 0 : i32
    return %2, %c0_i32_0 : i32, i32
  }
  func.func @transform_3(%arg0: i32, %arg1: i32) -> (i32, i32) {
    %c1_i32 = arith.constant 1 : i32
    %0 = arith.muli %arg0, %c1_i32 : i32
    %1 = arith.addi %0, %arg1 : i32
    %c0_i32 = arith.constant 0 : i32
    %2 = arith.minsi %1, %c0_i32 : i32
    %c0_i32_0 = arith.constant 0 : i32
    %c0_i32_1 = arith.constant 0 : i32
    return %2, %c0_i32_0 : i32, i32
  }
  func.func @transform_4(%arg0: i32, %arg1: i32) -> (i32, i32) {
    %c1_i32 = arith.constant 1 : i32
    %0 = arith.muli %arg0, %c1_i32 : i32
    %1 = arith.addi %0, %arg1 : i32
    %c0_i32 = arith.constant 0 : i32
    %2 = arith.minsi %1, %c0_i32 : i32
    %c0_i32_0 = arith.constant 0 : i32
    %c0_i32_1 = arith.constant 0 : i32
    return %2, %c0_i32_0 : i32, i32
  }
  func.func @transform_5(%arg0: i32, %arg1: i32) -> (i32, i32) {
    %c1_i32 = arith.constant 1 : i32
    %0 = arith.muli %arg0, %c1_i32 : i32
    %1 = arith.addi %0, %arg1 : i32
    %c0_i32 = arith.constant 0 : i32
    %2 = arith.minsi %1, %c0_i32 : i32
    %c0_i32_0 = arith.constant 0 : i32
    %c0_i32_1 = arith.constant 0 : i32
    return %2, %c0_i32_0 : i32, i32
  }
  func.func @transform_6(%arg0: i32, %arg1: i32) -> (i32, i32, i32) {
    %c0_i32 = arith.constant 0 : i32
    %c0_i32_0 = arith.constant 0 : i32
    %c0_i32_1 = arith.constant 0 : i32
    return %arg0, %c0_i32, %c0_i32_0 : i32, i32, i32
  }
}

</mosaic_0001>

<llo_original>
// kernel: tpu_custom_call.1
$region0: #{tpu_custom_call.1}
  #allocation0 [shape = 'u32[]', space=smem, size = 0x4, offset = 0x4, fixed_abs, tag = 'smem constant byte address 0x4 - core index']
  #allocation1 [shape = 'u32[72,128]{1,0:T(1,128)}', space=vmem, size = 0x9000, scoped, tag = 'internal scratch']
  #allocation2 [shape = 'f32[1,128]{1,0:T(1,128)}', space=vmem, size = 0x200, scoped, tag = 'scratch operand']
  #allocation3 [shape = 'f32[1,128]{1,0:T(1,128)}', space=vmem, size = 0x200, scoped, tag = 'scratch operand']
  #allocation4 [shape = 'f32[1,128]{1,0:T(1,128)}', space=vmem, size = 0x200, scoped, tag = 'scratch operand']
  %s0 = inlined_call_operand.hbm [shape: f32[16,128], index: 0, kind: input, shape index: {}]
  %s1 = inlined_call_operand.hbm [shape: f32[16,128], index: 1, kind: input, shape index: {}]
  %s2 = inlined_call_operand.hbm [shape: f32[16,128], index: 2, kind: input, shape index: {}]
  %s3 = inlined_call_operand.hbm [shape: f32[16,128], index: 3, kind: input, shape index: {}]
  %s4 = inlined_call_operand.hbm [shape: f32[16,128], index: 4, kind: input, shape index: {}]
  %s5 = inlined_call_operand.hbm [shape: f32[16,128], index: 5, kind: input, shape index: {}]
  %s6 = inlined_call_operand.hbm [shape: f32[2,1,128], index: 6, kind: output, shape index: {}]
  %s7 = sld [smem:[#allocation0]]
  $region97: #{tpu_custom_call.1} parent=0
    _
  %s9 = ssub.s32 1, %s7
  %s10 = scalar_select 0, %s9, %s7
  $region1: #{tpu_custom_call.1} parent=0
    #allocation5 [shape = 'u8[16384]{0}', space=vmem, size = 0x4000, scoped, tag = 'input window, operand 0']
    #allocation6 [shape = 's32[2]{0}', space=sflag, size = 0x8, scoped, tag = 'scoped memory for tpu_custom_call.1']
    #allocation7 [shape = 's32[2]{0}', space=sflag, size = 0x8, scoped, tag = 'scoped memory for tpu_custom_call.1']
    #allocation8 [shape = 'u8[16384]{0}', space=vmem, size = 0x4000, scoped, tag = 'input window, operand 1']
    #allocation9 [shape = 's32[2]{0}', space=sflag, size = 0x8, scoped, tag = 'scoped memory for tpu_custom_call.1']
    #allocation10 [shape = 'u8[16384]{0}', space=vmem, size = 0x4000, scoped, tag = 'input window, operand 2']
    #allocation11 [shape = 'u8[16384]{0}', space=vmem, size = 0x4000, scoped, tag = 'input window, operand 3']
    #allocation12 [shape = 's32[2]{0}', space=sflag, size = 0x8, scoped, tag = 'scoped memory for tpu_custom_call.1']
    #allocation13 [shape = 'u8[16384]{0}', space=vmem, size = 0x4000, scoped, tag = 'input window, operand 4']
    #allocation14 [shape = 'u8[16384]{0}', space=vmem, size = 0x4000, scoped, tag = 'input window, operand 5']
    #allocation15 [shape = 's32[2]{0}', space=sflag, size = 0x8, scoped, tag = 'scoped memory for tpu_custom_call.1']
    #allocation16 [shape = 'u8[1024]{0}', space=vmem, size = 0x400, scoped, tag = 'output window, operand 0']
    %11 = vsyncpa [#allocation6], 0
    %s12 = scalar_lea.sflag [#allocation6], 1
    %13 = vsyncpa %s12, 0
    %14 = vsyncpa [#allocation9], 0
    %s15 = scalar_lea.sflag [#allocation9], 1
    %16 = vsyncpa %s15, 0
    %17 = vsyncpa [#allocation12], 0
    %s18 = scalar_lea.sflag [#allocation12], 1
    %19 = vsyncpa %s18, 0
    %20 = vsyncpa [#allocation15], 0
    %s21 = scalar_lea.sflag [#allocation15], 1
    %22 = vsyncpa %s21, 0
    %23 = vsyncpa [#allocation7], 0
    %s24 = scalar_lea.sflag [#allocation7], 1
    %25 = vsyncpa %s24, 0
    loop: start=0, step=1, limit=4
    $region2: #{tpu_custom_call.1} parent=1 // loop_pre_header
      _
    $region3: #{tpu_custom_call.1} parent=1 // loop_header
      %s27 = sphi 0, %s31
      %p28 = scmp.ge.s32.totalorder %s27, 4
      %s34 = sphi 0, %s46
      %s35 = sphi 0, %s42
      %s36 = sphi 0, %s34
      %s37 = sphi 0, %s35
      %s38 = sphi 0, %s36
      %s39 = sphi 0, %s37
      %s55 = sphi 0, %s57
      %s58 = sphi 0, %s55
      %s59 = sphi 0, %s58
      %s75 = sphi 0, %s59
      %s87 = sphi 0, %s89
      %s90 = sphi 0, %s87
      %s91 = sphi 0, %s90
      %s107 = sphi 0, %s91
      %s119 = sphi 0, %s121
      %s122 = sphi 0, %s119
      %s123 = sphi 0, %s122
      %s139 = sphi 0, %s123
      %s151 = sphi 0, %s153
      %s154 = sphi 0, %s151
      %s155 = sphi 0, %s154
      %s171 = sphi 0, %s155
      %s183 = sphi 0, %s185
      %s186 = sphi 0, %s183
      %s187 = sphi 0, %s186
      %s203 = sphi 0, %s187
      %s215 = sphi 0, %s217
      %s218 = sphi 0, %s215
      %s219 = sphi 0, %s218
      %s235 = sphi 0, %s219
      %s241 = sphi 0, %s243
      %s244 = sphi 0, %s241
      %s245 = sphi 0, %s244
      %s261 = sphi 0, %s245
    $region4: #{tpu_custom_call.1} parent=1 // loop_header_branch
      %30 = sbr.rel (%p28) target = $region8
    $region5: #{tpu_custom_call.1} parent=1 // loop_body
      %s32 = ssub.s32 %s27, 1
      %s33 = ssub.s32 %s27, 2
      %s40 = sadd.s32 1, %s35
      %p41 = scmp.ge.s32.totalorder %s40, 1
      %s42 = scalar_select %p41, 0, %s40
      %s43 = sadd.s32 1, %s34
      %s44 = scalar_select %p41, %s43, %s34
      %p45 = scmp.ge.s32.totalorder %s44, 2
      %s46 = scalar_select %p45, 0, %s44
      %s47 = sadd.s32 %s34, %s35
      %p48 = scmp.lt.s32.totalorder %s47, 0
      %s49 = scalar_select %p48, %s47, 0
      %s50 = sadd.s32 %s46, %s42
      %p51 = scmp.lt.s32.totalorder %s50, 0
      %s52 = scalar_select %p51, %s50, 0
      %s53 = ssub.s32 %s49, %s52
      %p54 = scmp.eq.s32.totalorder %s53, 0
      %s56 = sadd.s32 %s55, 1
      %s57 = scalar_select %p54, %s55, %s56
      %p60 = pneg %p54
      %p61 = scmp.eq.s32.totalorder %s27, 1
      %p62 = por %p60, %p61
      %p63 = scmp.ne.s32.totalorder %s55, %s58
      %p64 = scmp.eq.s32.totalorder %s27, 0
      %p65 = por %p63, %p64
      %p66 = scmp.ne.s32.totalorder %s55, %s58
      %p67 = scmp.eq.s32.totalorder %s32, 1
      %p68 = por %p66, %p67
      %p69 = scmp.ne.s32.totalorder %s58, %s59
      %p70 = scmp.eq.s32.totalorder %s32, 0
      %p71 = por %p69, %p70
      %p72 = scmp.ne.s32.totalorder %s58, %s59
      %p73 = scmp.eq.s32.totalorder %s33, 1
      %p74 = por %p72, %p73
      %p76 = scmp.ne.s32.totalorder %s59, %s75
      %p77 = scmp.eq.s32.totalorder %s33, 0
      %p78 = por %p76, %p77
      %s79 = sadd.s32 %s34, %s35
      %p80 = scmp.lt.s32.totalorder %s79, 0
      %s81 = scalar_select %p80, %s79, 0
      %s82 = sadd.s32 %s46, %s42
      %p83 = scmp.lt.s32.totalorder %s82, 0
      %s84 = scalar_select %p83, %s82, 0
      %s85 = ssub.s32 %s81, %s84
      %p86 = scmp.eq.s32.totalorder %s85, 0
      %s88 = sadd.s32 %s87, 1
      %s89 = scalar_select %p86, %s87, %s88
      %p92 = pneg %p86
      %p93 = scmp.eq.s32.totalorder %s27, 1
      %p94 = por %p92, %p93
      %p95 = scmp.ne.s32.totalorder %s87, %s90
      %p96 = scmp.eq.s32.totalorder %s27, 0
      %p97 = por %p95, %p96
      %p98 = scmp.ne.s32.totalorder %s87, %s90
      %p99 = scmp.eq.s32.totalorder %s32, 1
      %p100 = por %p98, %p99
      %p101 = scmp.ne.s32.totalorder %s90, %s91
      %p102 = scmp.eq.s32.totalorder %s32, 0
      %p103 = por %p101, %p102
      %p104 = scmp.ne.s32.totalorder %s90, %s91
      %p105 = scmp.eq.s32.totalorder %s33, 1
      %p106 = por %p104, %p105
      %p108 = scmp.ne.s32.totalorder %s91, %s107
      %p109 = scmp.eq.s32.totalorder %s33, 0
      %p110 = por %p108, %p109
      %s111 = sadd.s32 %s34, %s35
      %p112 = scmp.lt.s32.totalorder %s111, 0
      %s113 = scalar_select %p112, %s111, 0
      %s114 = sadd.s32 %s46, %s42
      %p115 = scmp.lt.s32.totalorder %s114, 0
      %s116 = scalar_select %p115, %s114, 0
      %s117 = ssub.s32 %s113, %s116
      %p118 = scmp.eq.s32.totalorder %s117, 0
      %s120 = sadd.s32 %s119, 1
      %s121 = scalar_select %p118, %s119, %s120
      %p124 = pneg %p118
      %p125 = scmp.eq.s32.totalorder %s27, 1
      %p126 = por %p124, %p125
      %p127 = scmp.ne.s32.totalorder %s119, %s122
      %p128 = scmp.eq.s32.totalorder %s27, 0
      %p129 = por %p127, %p128
      %p130 = scmp.ne.s32.totalorder %s119, %s122
      %p131 = scmp.eq.s32.totalorder %s32, 1
      %p132 = por %p130, %p131
      %p133 = scmp.ne.s32.totalorder %s122, %s123
      %p134 = scmp.eq.s32.totalorder %s32, 0
      %p135 = por %p133, %p134
      %p136 = scmp.ne.s32.totalorder %s122, %s123
      %p137 = scmp.eq.s32.totalorder %s33, 1
      %p138 = por %p136, %p137
      %p140 = scmp.ne.s32.totalorder %s123, %s139
      %p141 = scmp.eq.s32.totalorder %s33, 0
      %p142 = por %p140, %p141
      %s143 = sadd.s32 %s34, %s35
      %p144 = scmp.lt.s32.totalorder %s143, 0
      %s145 = scalar_select %p144, %s143, 0
      %s146 = sadd.s32 %s46, %s42
      %p147 = scmp.lt.s32.totalorder %s146, 0
      %s148 = scalar_select %p147, %s146, 0
      %s149 = ssub.s32 %s145, %s148
      %p150 = scmp.eq.s32.totalorder %s149, 0
      %s152 = sadd.s32 %s151, 1
      %s153 = scalar_select %p150, %s151, %s152
      %p156 = pneg %p150
      %p157 = scmp.eq.s32.totalorder %s27, 1
      %p158 = por %p156, %p157
      %p159 = scmp.ne.s32.totalorder %s151, %s154
      %p160 = scmp.eq.s32.totalorder %s27, 0
      %p161 = por %p159, %p160
      %p162 = scmp.ne.s32.totalorder %s151, %s154
      %p163 = scmp.eq.s32.totalorder %s32, 1
      %p164 = por %p162, %p163
      %p165 = scmp.ne.s32.totalorder %s154, %s155
      %p166 = scmp.eq.s32.totalorder %s32, 0
      %p167 = por %p165, %p166
      %p168 = scmp.ne.s32.totalorder %s154, %s155
      %p169 = scmp.eq.s32.totalorder %s33, 1
      %p170 = por %p168, %p169
      %p172 = scmp.ne.s32.totalorder %s155, %s171
      %p173 = scmp.eq.s32.totalorder %s33, 0
      %p174 = por %p172, %p173
      %s175 = sadd.s32 %s34, %s35
      %p176 = scmp.lt.s32.totalorder %s175, 0
      %s177 = scalar_select %p176, %s175, 0
      %s178 = sadd.s32 %s46, %s42
      %p179 = scmp.lt.s32.totalorder %s178, 0
      %s180 = scalar_select %p179, %s178, 0
      %s181 = ssub.s32 %s177, %s180
      %p182 = scmp.eq.s32.totalorder %s181, 0
      %s184 = sadd.s32 %s183, 1
      %s185 = scalar_select %p182, %s183, %s184
      %p188 = pneg %p182
      %p189 = scmp.eq.s32.totalorder %s27, 1
      %p190 = por %p188, %p189
      %p191 = scmp.ne.s32.totalorder %s183, %s186
      %p192 = scmp.eq.s32.totalorder %s27, 0
      %p193 = por %p191, %p192
      %p194 = scmp.ne.s32.totalorder %s183, %s186
      %p195 = scmp.eq.s32.totalorder %s32, 1
      %p196 = por %p194, %p195
      %p197 = scmp.ne.s32.totalorder %s186, %s187
      %p198 = scmp.eq.s32.totalorder %s32, 0
      %p199 = por %p197, %p198
      %p200 = scmp.ne.s32.totalorder %s186, %s187
      %p201 = scmp.eq.s32.totalorder %s33, 1
      %p202 = por %p200, %p201
      %p204 = scmp.ne.s32.totalorder %s187, %s203
      %p205 = scmp.eq.s32.totalorder %s33, 0
      %p206 = por %p204, %p205
      %s207 = sadd.s32 %s34, %s35
      %p208 = scmp.lt.s32.totalorder %s207, 0
      %s209 = scalar_select %p208, %s207, 0
      %s210 = sadd.s32 %s46, %s42
      %p211 = scmp.lt.s32.totalorder %s210, 0
      %s212 = scalar_select %p211, %s210, 0
      %s213 = ssub.s32 %s209, %s212
      %p214 = scmp.eq.s32.totalorder %s213, 0
      %s216 = sadd.s32 %s215, 1
      %s217 = scalar_select %p214, %s215, %s216
      %p220 = pneg %p214
      %p221 = scmp.eq.s32.totalorder %s27, 1
      %p222 = por %p220, %p221
      %p223 = scmp.ne.s32.totalorder %s215, %s218
      %p224 = scmp.eq.s32.totalorder %s27, 0
      %p225 = por %p223, %p224
      %p226 = scmp.ne.s32.totalorder %s215, %s218
      %p227 = scmp.eq.s32.totalorder %s32, 1
      %p228 = por %p226, %p227
      %p229 = scmp.ne.s32.totalorder %s218, %s219
      %p230 = scmp.eq.s32.totalorder %s32, 0
      %p231 = por %p229, %p230
      %p232 = scmp.ne.s32.totalorder %s218, %s219
      %p233 = scmp.eq.s32.totalorder %s33, 1
      %p234 = por %p232, %p233
      %p236 = scmp.ne.s32.totalorder %s219, %s235
      %p237 = scmp.eq.s32.totalorder %s33, 0
      %p238 = por %p236, %p237
      %s239 = ssub.s32 %s34, %s46
      %p240 = scmp.eq.s32.totalorder %s239, 0
      %s242 = sadd.s32 %s241, 1
      %s243 = scalar_select %p240, %s241, %s242
      %p246 = pneg %p240
      %p247 = scmp.eq.s32.totalorder %s27, 1
      %p248 = por %p246, %p247
      %p249 = scmp.ne.s32.totalorder %s241, %s244
      %p250 = scmp.eq.s32.totalorder %s27, 0
      %p251 = por %p249, %p250
      %p252 = scmp.ne.s32.totalorder %s241, %s244
      %p253 = scmp.eq.s32.totalorder %s32, 1
      %p254 = por %p252, %p253
      %p255 = scmp.ne.s32.totalorder %s244, %s245
      %p256 = scmp.eq.s32.totalorder %s32, 0
      %p257 = por %p255, %p256
      %p258 = scmp.ne.s32.totalorder %s244, %s245
      %p259 = scmp.eq.s32.totalorder %s33, 1
      %p260 = por %p258, %p259
      %p262 = scmp.ne.s32.totalorder %s245, %s261
      %p263 = scmp.eq.s32.totalorder %s33, 0
      %p264 = por %p262, %p263
      %p265 = scmp.le.s32.totalorder 1, %s27
      %p266 = scmp.lt.s32.totalorder %s27, 3
      %p267 = pnand %p265, %p266
      %p268 = pneg %p267
      // Predicated region
      $region9: #{tpu_custom_call.1} parent=5 // pred_check
        _
      $region10: #{tpu_custom_call.1} parent=5 // pred_check_branch
        %270 = sbr.rel (%p267) target = $region12
      $region11: #{tpu_custom_call.1} parent=5 // pred_region
        %s271 = ssub.s32 %s27, 1
      $region12: #{tpu_custom_call.1} parent=5 // pred_fallthru
        _
      %p272 = scmp.lt.s32.totalorder %s27, 2
      // Predicated region
      $region13: #{tpu_custom_call.1} parent=5 // pred_check
        %p273 = pneg %p272
      $region14: #{tpu_custom_call.1} parent=5 // pred_check_branch
        %275 = sbr.rel (%p273) target = $region16
      $region15: #{tpu_custom_call.1} parent=5 // pred_region
        // Predicated region
        $region17: #{tpu_custom_call.1} parent=15 // pred_check
          %p276 = pneg %p65
        $region18: #{tpu_custom_call.1} parent=15 // pred_check_branch
          %278 = sbr.rel (%p276) target = $region20
        $region19: #{tpu_custom_call.1} parent=15 // pred_region
          %s279 = sand.u32 %s55, 1
          %s280 = scalar_lea.sflag [#allocation6], %s279
          %s281 = sand.u32 %s55, 1
          %s282 = smul.addr %s281, 16
          %s283 = scalar_lea.vmem [#allocation5], %s282
          %s284 = sadd.s32 %s34, %s35
          %p285 = scmp.lt.s32.totalorder %s284, 0
          %s286 = scalar_select %p285, %s284, 0
          %s287 = smul.u32 2, %s286
          %289 = vsyncadd %s280, 0
          %s290 = smul.addr %s287, 8
          %s291 = scalar_lea.hbm %s0, %s290
          %s292 = sshll.u32 %s291, 4
          %s293 = int_to_ptr.hbm [resolvable:$true] %s292
          %s294 = sshll.u32 %s283, 4
          %s295 = int_to_ptr.vmem [resolvable:$true] %s294
          %300 = dma.hbm_to_vmem [thread:$0]  %s293, 256, %s295, %s280, 128, 128, 8
        $region20: #{tpu_custom_call.1} parent=15 // pred_fallthru
          _
        // Predicated region
        $region21: #{tpu_custom_call.1} parent=15 // pred_check
          %p301 = pneg %p97
        $region22: #{tpu_custom_call.1} parent=15 // pred_check_branch
          %303 = sbr.rel (%p301) target = $region24
        $region23: #{tpu_custom_call.1} parent=15 // pred_region
          %s304 = sand.u32 %s27, 1
          %s305 = scalar_lea.sflag [#allocation9], %s304
          %s306 = sand.u32 %s87, 1
          %s307 = smul.addr %s306, 16
          %s308 = scalar_lea.vmem [#allocation8], %s307
          %s309 = sadd.s32 %s34, %s35
          %p310 = scmp.lt.s32.totalorder %s309, 0
          %s311 = scalar_select %p310, %s309, 0
          %s312 = smul.u32 2, %s311
          %314 = vsyncadd %s305, 0
          %s315 = smul.addr %s312, 8
          %s316 = scalar_lea.hbm %s1, %s315
          %s317 = sshll.u32 %s316, 4
          %s318 = int_to_ptr.hbm [resolvable:$true] %s317
          %s319 = sshll.u32 %s308, 4
          %s320 = int_to_ptr.vmem [resolvable:$true] %s319
          %325 = dma.hbm_to_vmem [thread:$0]  %s318, 256, %s320, %s305, 128, 128, 8
        $region24: #{tpu_custom_call.1} parent=15 // pred_fallthru
          _
        // Predicated region
        $region25: #{tpu_custom_call.1} parent=15 // pred_check
          %p326 = pneg %p129
        $region26: #{tpu_custom_call.1} parent=15 // pred_check_branch
          %328 = sbr.rel (%p326) target = $region28
        $region27: #{tpu_custom_call.1} parent=15 // pred_region
          %s329 = sand.u32 %s27, 1
          %s330 = scalar_lea.sflag [#allocation9], %s329
          %s331 = sand.u32 %s119, 1
          %s332 = smul.addr %s331, 16
          %s333 = scalar_lea.vmem [#allocation10], %s332
          %s334 = sadd.s32 %s34, %s35
          %p335 = scmp.lt.s32.totalorder %s334, 0
          %s336 = scalar_select %p335, %s334, 0
          %s337 = smul.u32 2, %s336
          %339 = vsyncadd %s330, 0
          %s340 = smul.addr %s337, 8
          %s341 = scalar_lea.hbm %s2, %s340
          %s342 = sshll.u32 %s341, 4
          %s343 = int_to_ptr.hbm [resolvable:$true] %s342
          %s344 = sshll.u32 %s333, 4
          %s345 = int_to_ptr.vmem [resolvable:$true] %s344
          %350 = dma.hbm_to_vmem [thread:$0]  %s343, 256, %s345, %s330, 128, 128, 8
        $region28: #{tpu_custom_call.1} parent=15 // pred_fallthru
          _
        // Predicated region
        $region29: #{tpu_custom_call.1} parent=15 // pred_check
          %p351 = pneg %p161
        $region30: #{tpu_custom_call.1} parent=15 // pred_check_branch
          %353 = sbr.rel (%p351) target = $region32
        $region31: #{tpu_custom_call.1} parent=15 // pred_region
          %s354 = sand.u32 %s27, 1
          %s355 = scalar_lea.sflag [#allocation12], %s354
          %s356 = sand.u32 %s151, 1
          %s357 = smul.addr %s356, 16
          %s358 = scalar_lea.vmem [#allocation11], %s357
          %s359 = sadd.s32 %s34, %s35
          %p360 = scmp.lt.s32.totalorder %s359, 0
          %s361 = scalar_select %p360, %s359, 0
          %s362 = smul.u32 2, %s361
          %364 = vsyncadd %s355, 0
          %s365 = smul.addr %s362, 8
          %s366 = scalar_lea.hbm %s3, %s365
          %s367 = sshll.u32 %s366, 4
          %s368 = int_to_ptr.hbm [resolvable:$true] %s367
          %s369 = sshll.u32 %s358, 4
          %s370 = int_to_ptr.vmem [resolvable:$true] %s369
          %375 = dma.hbm_to_vmem [thread:$0]  %s368, 256, %s370, %s355, 128, 128, 8
        $region32: #{tpu_custom_call.1} parent=15 // pred_fallthru
          _
        // Predicated region
        $region33: #{tpu_custom_call.1} parent=15 // pred_check
          %p376 = pneg %p193
        $region34: #{tpu_custom_call.1} parent=15 // pred_check_branch
          %378 = sbr.rel (%p376) target = $region36
        $region35: #{tpu_custom_call.1} parent=15 // pred_region
          %s379 = sand.u32 %s27, 1
          %s380 = scalar_lea.sflag [#allocation12], %s379
          %s381 = sand.u32 %s183, 1
          %s382 = smul.addr %s381, 16
          %s383 = scalar_lea.vmem [#allocation13], %s382
          %s384 = sadd.s32 %s34, %s35
          %p385 = scmp.lt.s32.totalorder %s384, 0
          %s386 = scalar_select %p385, %s384, 0
          %s387 = smul.u32 2, %s386
          %389 = vsyncadd %s380, 0
          %s390 = smul.addr %s387, 8
          %s391 = scalar_lea.hbm %s4, %s390
          %s392 = sshll.u32 %s391, 4
          %s393 = int_to_ptr.hbm [resolvable:$true] %s392
          %s394 = sshll.u32 %s383, 4
          %s395 = int_to_ptr.vmem [resolvable:$true] %s394
          %400 = dma.hbm_to_vmem [thread:$0]  %s393, 256, %s395, %s380, 128, 128, 8
        $region36: #{tpu_custom_call.1} parent=15 // pred_fallthru
          _
        // Predicated region
        $region37: #{tpu_custom_call.1} parent=15 // pred_check
          %p401 = pneg %p225
        $region38: #{tpu_custom_call.1} parent=15 // pred_check_branch
          %403 = sbr.rel (%p401) target = $region40
        $region39: #{tpu_custom_call.1} parent=15 // pred_region
          %s404 = sand.u32 %s215, 1
          %s405 = scalar_lea.sflag [#allocation15], %s404
          %s406 = sand.u32 %s215, 1
          %s407 = smul.addr %s406, 16
          %s408 = scalar_lea.vmem [#allocation14], %s407
          %s409 = sadd.s32 %s34, %s35
          %p410 = scmp.lt.s32.totalorder %s409, 0
          %s411 = scalar_select %p410, %s409, 0
          %s412 = smul.u32 2, %s411
          %414 = vsyncadd %s405, 0
          %s415 = smul.addr %s412, 8
          %s416 = scalar_lea.hbm %s5, %s415
          %s417 = sshll.u32 %s416, 4
          %s418 = int_to_ptr.hbm [resolvable:$true] %s417
          %s419 = sshll.u32 %s408, 4
          %s420 = int_to_ptr.vmem [resolvable:$true] %s419
          %425 = dma.hbm_to_vmem [thread:$0]  %s418, 256, %s420, %s405, 128, 128, 8
        $region40: #{tpu_custom_call.1} parent=15 // pred_fallthru
          _
      $region16: #{tpu_custom_call.1} parent=5 // pred_fallthru
        _
      %p426 = scmp.le.s32.totalorder 1, %s27
      %p427 = scmp.lt.s32.totalorder %s27, 3
      %p428 = pnand %p426, %p427
      %p429 = pneg %p428
      // Predicated region
      $region41: #{tpu_custom_call.1} parent=5 // pred_check
        _
      $region42: #{tpu_custom_call.1} parent=5 // pred_check_branch
        %431 = sbr.rel (%p428) target = $region44
      $region43: #{tpu_custom_call.1} parent=5 // pred_region
        %s432 = ssub.s32 %s27, 1
        %s433 = sand.u32 %s58, 1
        %s434 = scalar_lea.sflag [#allocation6], %s433
        %s435 = sand.u32 %s58, 1
        %s436 = smul.addr %s435, 16
        %s437 = scalar_lea.vmem [#allocation5], %s436
        // Predicated region
        $region45: #{tpu_custom_call.1} parent=43 // pred_check
          %p438 = pneg %p71
        $region46: #{tpu_custom_call.1} parent=43 // pred_check_branch
          %440 = sbr.rel (%p438) target = $region48
        $region47: #{tpu_custom_call.1} parent=43 // pred_region
          %442 = dma.done %s434, 256
        $region48: #{tpu_custom_call.1} parent=43 // pred_fallthru
          _
        %s443 = sand.u32 %s32, 1
        %s444 = scalar_lea.sflag [#allocation9], %s443
        %s445 = sand.u32 %s90, 1
        %s446 = smul.addr %s445, 16
        %s447 = scalar_lea.vmem [#allocation8], %s446
        // Predicated region
        $region49: #{tpu_custom_call.1} parent=43 // pred_check
          %p448 = pneg %p103
        $region50: #{tpu_custom_call.1} parent=43 // pred_check_branch
          %450 = sbr.rel (%p448) target = $region52
        $region51: #{tpu_custom_call.1} parent=43 // pred_region
          %452 = dma.done %s444, 256
        $region52: #{tpu_custom_call.1} parent=43 // pred_fallthru
          _
        %s453 = sand.u32 %s32, 1
        %s454 = scalar_lea.sflag [#allocation9], %s453
        %s455 = sand.u32 %s122, 1
        %s456 = smul.addr %s455, 16
        %s457 = scalar_lea.vmem [#allocation10], %s456
        // Predicated region
        $region53: #{tpu_custom_call.1} parent=43 // pred_check
          %p458 = pneg %p135
        $region54: #{tpu_custom_call.1} parent=43 // pred_check_branch
          %460 = sbr.rel (%p458) target = $region56
        $region55: #{tpu_custom_call.1} parent=43 // pred_region
          %462 = dma.done %s454, 256
        $region56: #{tpu_custom_call.1} parent=43 // pred_fallthru
          _
        %s463 = sand.u32 %s32, 1
        %s464 = scalar_lea.sflag [#allocation12], %s463
        %s465 = sand.u32 %s154, 1
        %s466 = smul.addr %s465, 16
        %s467 = scalar_lea.vmem [#allocation11], %s466
        // Predicated region
        $region57: #{tpu_custom_call.1} parent=43 // pred_check
          %p468 = pneg %p167
        $region58: #{tpu_custom_call.1} parent=43 // pred_check_branch
          %470 = sbr.rel (%p468) target = $region60
        $region59: #{tpu_custom_call.1} parent=43 // pred_region
          %472 = dma.done %s464, 256
        $region60: #{tpu_custom_call.1} parent=43 // pred_fallthru
          _
        %s473 = sand.u32 %s32, 1
        %s474 = scalar_lea.sflag [#allocation12], %s473
        %s475 = sand.u32 %s186, 1
        %s476 = smul.addr %s475, 16
        %s477 = scalar_lea.vmem [#allocation13], %s476
        // Predicated region
        $region61: #{tpu_custom_call.1} parent=43 // pred_check
          %p478 = pneg %p199
        $region62: #{tpu_custom_call.1} parent=43 // pred_check_branch
          %480 = sbr.rel (%p478) target = $region64
        $region63: #{tpu_custom_call.1} parent=43 // pred_region
          %482 = dma.done %s474, 256
        $region64: #{tpu_custom_call.1} parent=43 // pred_fallthru
          _
        %s483 = sand.u32 %s218, 1
        %s484 = scalar_lea.sflag [#allocation15], %s483
        %s485 = sand.u32 %s218, 1
        %s486 = smul.addr %s485, 16
        %s487 = scalar_lea.vmem [#allocation14], %s486
        // Predicated region
        $region65: #{tpu_custom_call.1} parent=43 // pred_check
          %p488 = pneg %p231
        $region66: #{tpu_custom_call.1} parent=43 // pred_check_branch
          %490 = sbr.rel (%p488) target = $region68
        $region67: #{tpu_custom_call.1} parent=43 // pred_region
          %492 = dma.done %s484, 256
        $region68: #{tpu_custom_call.1} parent=43 // pred_fallthru
          _
        %s493 = sand.u32 %s58, 1
        %s494 = scalar_lea.sflag [#allocation6], %s493
        %s495 = sand.u32 %s58, 1
        %s496 = smul.addr %s495, 16
        %s497 = scalar_lea.vmem [#allocation5], %s496
        %p498 = pneg %p71
        %p499 = pneg %p68
        %s500 = sand.u32 %s32, 1
        %s501 = scalar_lea.sflag [#allocation9], %s500
        %s502 = sand.u32 %s90, 1
        %s503 = smul.addr %s502, 16
        %s504 = scalar_lea.vmem [#allocation8], %s503
        %p505 = pneg %p103
        %p506 = pneg %p100
        %s507 = sand.u32 %s32, 1
        %s508 = scalar_lea.sflag [#allocation9], %s507
        %s509 = sand.u32 %s122, 1
        %s510 = smul.addr %s509, 16
        %s511 = scalar_lea.vmem [#allocation10], %s510
        %p512 = pneg %p135
        %p513 = pneg %p132
        %s514 = sand.u32 %s32, 1
        %s515 = scalar_lea.sflag [#allocation12], %s514
        %s516 = sand.u32 %s154, 1
        %s517 = smul.addr %s516, 16
        %s518 = scalar_lea.vmem [#allocation11], %s517
        %p519 = pneg %p167
        %p520 = pneg %p164
        %s521 = sand.u32 %s32, 1
        %s522 = scalar_lea.sflag [#allocation12], %s521
        %s523 = sand.u32 %s186, 1
        %s524 = smul.addr %s523, 16
        %s525 = scalar_lea.vmem [#allocation13], %s524
        %p526 = pneg %p199
        %p527 = pneg %p196
        %s528 = sand.u32 %s218, 1
        %s529 = scalar_lea.sflag [#allocation15], %s528
        %s530 = sand.u32 %s218, 1
        %s531 = smul.addr %s530, 16
        %s532 = scalar_lea.vmem [#allocation14], %s531
        %p533 = pneg %p231
        %p534 = pneg %p228
        %p535 = pneg %p257
        %p536 = pneg %p254
        %s537 = sand.u32 %s244, 1
        %s538 = scalar_lea.sflag [#allocation7], %s537
        %s539 = sand.u32 %s244, 1
        %s540 = scalar_lea.vmem [#allocation16], %s539
        %s541 = sadd.s32 %s36, %s37
        %p542 = scmp.lt.s32.totalorder %s541, 0
        %s543 = scalar_select %p542, %s541, 0
        %s544 = smul.u32 2, %s543
        %s545 = sadd.s32 %s36, %s37
        %p546 = scmp.lt.s32.totalorder %s545, 0
        %s547 = scalar_select %p546, %s545, 0
        %s548 = smul.u32 2, %s547
        %s549 = sadd.s32 %s36, %s37
        %p550 = scmp.lt.s32.totalorder %s549, 0
        %s551 = scalar_select %p550, %s549, 0
        %s552 = smul.u32 2, %s551
        %s553 = sadd.s32 %s36, %s37
        %p554 = scmp.lt.s32.totalorder %s553, 0
        %s555 = scalar_select %p554, %s553, 0
        %s556 = smul.u32 2, %s555
        %s557 = sadd.s32 %s36, %s37
        %p558 = scmp.lt.s32.totalorder %s557, 0
        %s559 = scalar_select %p558, %s557, 0
        %s560 = smul.u32 2, %s559
        %s561 = sadd.s32 %s36, %s37
        %p562 = scmp.lt.s32.totalorder %s561, 0
        %s563 = scalar_select %p562, %s561, 0
        %s564 = smul.u32 2, %s563
        %p565 = scmp.eq.s32.totalorder %s37, 0
        // Predicated region
        $region69: #{tpu_custom_call.1} parent=43 // pred_check
          %p566 = pneg %p565
        $region70: #{tpu_custom_call.1} parent=43 // pred_check_branch
          %568 = sbr.rel (%p566) target = $region72
        $region71: #{tpu_custom_call.1} parent=43 // pred_region
          %569 = vst [vmem:[#allocation2] sm:$0x1] 0.0
          %570 = vst [vmem:[#allocation3] sm:$0x1] 0.0
          %571 = vst [vmem:[#allocation4] sm:$0x1] 0.0
        $region72: #{tpu_custom_call.1} parent=43 // pred_fallthru
          _
        %s572 = sadd.s32 %s36, %s37
        %s573 = smul.u32 %s572, 16
        %s574 = ssub.s32 16, %s573
        %p575 = scmp.ge.s32.totalorder %s574, 16
        // Predicated region
        $region73: #{tpu_custom_call.1} parent=43 // pred_check
          %p576 = pneg %p575
        $region74: #{tpu_custom_call.1} parent=43 // pred_check_branch
          %578 = sbr.rel (%p576) target = $region76
        $region75: #{tpu_custom_call.1} parent=43 // pred_region
          %v579 = vld [vmem:[%s437] sm:$0xff]
          %v580 = vld [vmem:[%s437 + $0x8] sm:$0xff]
          %v581 = vld [vmem:[%s447] sm:$0xff]
          %v582 = vld [vmem:[%s447 + $0x8] sm:$0xff]
          %v583 = vsub.f32 %v579, %v581
          %v584 = vsub.f32 %v580, %v582
          %v585 = vand.u32 2147483647, %v583
          %v586 = vand.u32 2147483647, %v584
          %v587 = vadd.f32 %v585, %v586
          %v588 = vrot.slane %v587, 4
          %v589 = vadd.f32 %v587, %v588
          %v590 = vrot.slane %v589, 2
          %v591 = vadd.f32 %v589, %v590
          %v592 = vrot.slane %v591, 1
          %v593 = vadd.f32 %v591, %v592
          %v594 = vadd.f32 %v593, 0.0
          %v595 = vld [vmem:[#allocation2] sm:$0x1]
          %v596 = vadd.f32 %v595, %v594
          %597 = vst [vmem:[#allocation2] sm:$0x1] %v596
          %v598 = vld [vmem:[%s457] sm:$0xff]
          %v599 = vld [vmem:[%s457 + $0x8] sm:$0xff]
          %v600 = vld [vmem:[%s467] sm:$0xff]
          %v601 = vld [vmem:[%s467 + $0x8] sm:$0xff]
          %v602 = vsub.f32 %v598, %v600
          %v603 = vsub.f32 %v599, %v601
          %v604 = vand.u32 2147483647, %v602
          %v605 = vand.u32 2147483647, %v603
          %v606 = vadd.f32 %v604, %v605
          %v607 = vrot.slane %v606, 4
          %v608 = vadd.f32 %v606, %v607
          %v609 = vrot.slane %v608, 2
          %v610 = vadd.f32 %v608, %v609
          %v611 = vrot.slane %v610, 1
          %v612 = vadd.f32 %v610, %v611
          %v613 = vadd.f32 %v612, 0.0
          %v614 = vld [vmem:[#allocation3] sm:$0x1]
          %v615 = vadd.f32 %v614, %v613
          %616 = vst [vmem:[#allocation3] sm:$0x1] %v615
          %v617 = vld [vmem:[%s477] sm:$0xff]
          %v618 = vld [vmem:[%s477 + $0x8] sm:$0xff]
          %v619 = vld [vmem:[%s487] sm:$0xff]
          %v620 = vld [vmem:[%s487 + $0x8] sm:$0xff]
          %v621 = vsub.f32 %v617, %v619
          %v622 = vsub.f32 %v618, %v620
          %v623 = vand.u32 2147483647, %v621
          %v624 = vand.u32 2147483647, %v622
          %v625 = vadd.f32 %v623, %v624
          %v626 = vrot.slane %v625, 4
          %v627 = vadd.f32 %v625, %v626
          %v628 = vrot.slane %v627, 2
          %v629 = vadd.f32 %v627, %v628
          %v630 = vrot.slane %v629, 1
          %v631 = vadd.f32 %v629, %v630
          %v632 = vadd.f32 %v631, 0.0
          %v633 = vld [vmem:[#allocation4] sm:$0x1]
          %v634 = vadd.f32 %v633, %v632
          %635 = vst [vmem:[#allocation4] sm:$0x1] %v634
        $region76: #{tpu_custom_call.1} parent=43 // pred_fallthru
          _
        %p636 = scmp.lt.s32.totalorder %s574, 16
        // Predicated region
        $region77: #{tpu_custom_call.1} parent=43 // pred_check
          %p637 = pneg %p636
        $region78: #{tpu_custom_call.1} parent=43 // pred_check_branch
          %639 = sbr.rel (%p637) target = $region80
        $region79: #{tpu_custom_call.1} parent=43 // pred_region
          %v640 = vld [vmem:[%s437] sm:$0xff]
          %v641 = vld [vmem:[%s437 + $0x8] sm:$0xff]
          %v642 = vld [vmem:[%s447] sm:$0xff]
          %v643 = vld [vmem:[%s447 + $0x8] sm:$0xff]
          %v644 = vsub.f32 %v640, %v642
          %v645 = vsub.f32 %v641, %v643
          %v646 = vand.u32 2147483647, %v644
          %v647 = vand.u32 2147483647, %v645
          %v648 = vlaneseq
          %v649 = vshrl.u32 %v648, 7
          %v650 = vadd.s32 %v649, 8
          %v651 = vstv %s574
          %vm652 = vcmp.lt.s32.totalorder %v649, %v651
          %vm653 = vcmp.lt.s32.totalorder %v650, %v651
          %v654 = vsel %vm652, 1, 0
          %v655 = vsel %vm653, 1, 0
          %vm656 = vcmp.eq.s32.totalorder %v654, 1
          %vm657 = vcmp.eq.s32.totalorder %v655, 1
          %v658 = vsel %vm656, %v646, 0.0
          %v659 = vsel %vm657, %v647, 0.0
          %v660 = vadd.f32 %v658, %v659
          %v661 = vrot.slane %v660, 4
          %v662 = vadd.f32 %v660, %v661
          %v663 = vrot.slane %v662, 2
          %v664 = vadd.f32 %v662, %v663
          %v665 = vrot.slane %v664, 1
          %v666 = vadd.f32 %v664, %v665
          %v667 = vadd.f32 %v666, 0.0
          %v668 = vld [vmem:[#allocation2] sm:$0x1]
          %v669 = vadd.f32 %v668, %v667
          %670 = vst [vmem:[#allocation2] sm:$0x1] %v669
          %v671 = vld [vmem:[%s457] sm:$0xff]
          %v672 = vld [vmem:[%s457 + $0x8] sm:$0xff]
          %v673 = vld [vmem:[%s467] sm:$0xff]
          %v674 = vld [vmem:[%s467 + $0x8] sm:$0xff]
          %v675 = vsub.f32 %v671, %v673
          %v676 = vsub.f32 %v672, %v674
          %v677 = vand.u32 2147483647, %v675
          %v678 = vand.u32 2147483647, %v676
          %v679 = vsel %vm656, %v677, 0.0
          %v680 = vsel %vm657, %v678, 0.0
          %v681 = vadd.f32 %v679, %v680
          %v682 = vrot.slane %v681, 4
          %v683 = vadd.f32 %v681, %v682
          %v684 = vrot.slane %v683, 2
          %v685 = vadd.f32 %v683, %v684
          %v686 = vrot.slane %v685, 1
          %v687 = vadd.f32 %v685, %v686
          %v688 = vadd.f32 %v687, 0.0
          %v689 = vld [vmem:[#allocation3] sm:$0x1]
          %v690 = vadd.f32 %v689, %v688
          %691 = vst [vmem:[#allocation3] sm:$0x1] %v690
          %v692 = vld [vmem:[%s477] sm:$0xff]
          %v693 = vld [vmem:[%s477 + $0x8] sm:$0xff]
          %v694 = vld [vmem:[%s487] sm:$0xff]
          %v695 = vld [vmem:[%s487 + $0x8] sm:$0xff]
          %v696 = vsub.f32 %v692, %v694
          %v697 = vsub.f32 %v693, %v695
          %v698 = vand.u32 2147483647, %v696
          %v699 = vand.u32 2147483647, %v697
          %v700 = vsel %vm656, %v698, 0.0
          %v701 = vsel %vm657, %v699, 0.0
          %v702 = vadd.f32 %v700, %v701
          %v703 = vrot.slane %v702, 4
          %v704 = vadd.f32 %v702, %v703
          %v705 = vrot.slane %v704, 2
          %v706 = vadd.f32 %v704, %v705
          %v707 = vrot.slane %v706, 1
          %v708 = vadd.f32 %v706, %v707
          %v709 = vadd.f32 %v708, 0.0
          %v710 = vld [vmem:[#allocation4] sm:$0x1]
          %v711 = vadd.f32 %v710, %v709
          %712 = vst [vmem:[#allocation4] sm:$0x1] %v711
        $region80: #{tpu_custom_call.1} parent=43 // pred_fallthru
          _
        // Predicated region
        $region81: #{tpu_custom_call.1} parent=43 // pred_check
          %p713 = pneg %p565
        $region82: #{tpu_custom_call.1} parent=43 // pred_check_branch
          %715 = sbr.rel (%p713) target = $region84
        $region83: #{tpu_custom_call.1} parent=43 // pred_region
          %v716 = vld [vmem:[#allocation2] sm:$0x1]
          %v717 = vmul.f32 %v716, 0.00048828125
          %v718 = vld [vmem:[#allocation3] sm:$0x1]
          %v719 = vmul.f32 %v718, 0.0009765625
          %v720 = vadd.f32 %v717, %v719
          %v721 = vld [vmem:[#allocation4] sm:$0x1]
          %v722 = vmul.f32 %v721, 0.0009765625
          %v723 = vadd.f32 %v720, %v722
          %724 = vst [vmem:[%s540] sm:$0x1] %v723
        $region84: #{tpu_custom_call.1} parent=43 // pred_fallthru
          _
        %s725 = sand.u32 %s244, 1
        %s726 = scalar_lea.sflag [#allocation7], %s725
        %s727 = sand.u32 %s244, 1
        %s728 = scalar_lea.vmem [#allocation16], %s727
        // Predicated region
        $region85: #{tpu_custom_call.1} parent=43 // pred_check
          %p729 = pneg %p254
        $region86: #{tpu_custom_call.1} parent=43 // pred_check_branch
          %731 = sbr.rel (%p729) target = $region88
        $region87: #{tpu_custom_call.1} parent=43 // pred_region
          %733 = vsyncadd %s726, 0
          %s734 = scalar_lea.hbm %s6, %s36
          %s736 = sshll.u32 %s728, 4
          %s737 = int_to_ptr.vmem [resolvable:$true] %s736
          %s738 = sshll.u32 %s734, 4
          %s739 = int_to_ptr.hbm [resolvable:$true] %s738
          %741 = dma.vmem_to_hbm [thread:$0]  %s737, 16, %s739, %s726
        $region88: #{tpu_custom_call.1} parent=43 // pred_fallthru
          _
      $region44: #{tpu_custom_call.1} parent=5 // pred_fallthru
        _
      %p742 = scmp.le.s32.totalorder 2, %s27
      // Predicated region
      $region89: #{tpu_custom_call.1} parent=5 // pred_check
        %p743 = pneg %p742
      $region90: #{tpu_custom_call.1} parent=5 // pred_check_branch
        %745 = sbr.rel (%p743) target = $region92
      $region91: #{tpu_custom_call.1} parent=5 // pred_region
        %s746 = ssub.s32 %s27, 2
        // Predicated region
        $region93: #{tpu_custom_call.1} parent=91 // pred_check
          %p747 = pneg %p260
        $region94: #{tpu_custom_call.1} parent=91 // pred_check_branch
          %749 = sbr.rel (%p747) target = $region96
        $region95: #{tpu_custom_call.1} parent=91 // pred_region
          %s750 = sand.u32 %s245, 1
          %s751 = scalar_lea.sflag [#allocation7], %s750
          %s752 = sand.u32 %s245, 1
          %s753 = scalar_lea.vmem [#allocation16], %s752
          %755 = dma.done %s751, 16
        $region96: #{tpu_custom_call.1} parent=91 // pred_fallthru
          _
      $region92: #{tpu_custom_call.1} parent=5 // pred_fallthru
        _
    $region6: #{tpu_custom_call.1} parent=1 // loop_footer
      %s31 = sadd.s32 1, %s27
    $region7: #{tpu_custom_call.1} parent=1 // loop_footer_branch
      %26 = sbr.rel target = $region3
    $region8: #{tpu_custom_call.1} parent=1 // loop_exit
      _
    %756 = vsyncpa [#allocation6], 1
    %s757 = scalar_lea.sflag [#allocation6], 1
    %758 = vsyncpa %s757, 1
    %759 = vsyncpa [#allocation9], 1
    %s760 = scalar_lea.sflag [#allocation9], 1
    %761 = vsyncpa %s760, 1
    %762 = vsyncpa [#allocation12], 1
    %s763 = scalar_lea.sflag [#allocation12], 1
    %764 = vsyncpa %s763, 1
    %765 = vsyncpa [#allocation15], 1
    %s766 = scalar_lea.sflag [#allocation15], 1
    %767 = vsyncpa %s766, 1
    %768 = vsyncpa [#allocation7], 1
    %s769 = scalar_lea.sflag [#allocation7], 1
    %770 = vsyncpa %s769, 1

</llo_original>
